<compile_context>
chip_gen: v7x
topology: tpu7x:2x2x1
jax: 0.10.0
libtpu: 0.0.40
codegen_flags: <defaults>
</compile_context>

<pallas_src>
import math

import jax
import jax.numpy as jnp
from jax.experimental import pallas as pl
from jax.experimental.pallas import tpu as pltpu

FREQ_DIM = 256          # frequency_embedding_size
HALF = FREQ_DIM // 2    # 128 (even -> the odd-dim zero-pad branch never triggers)
HIDDEN = 32             # hidden_size
MAX_PERIOD = 10000.0
DEFAULT_TILE_N = 2048   # ~3 MB live f32 intermediates per tile << 32 MiB scoped VMEM


def time_embedding_kernel(t_ref, freqs_ref, w1_ref, b1_ref, w2_ref, b2_ref, out_ref):
    """One batch tile: sinusoid -> Linear(256->32) -> SiLU -> Linear(32->32)."""
    # --- sinusoidal timestep embedding (VPU/EUP), f32 throughout ---
    t = t_ref[...]                       # (TILE_N, 1) f32
    args = t * freqs_ref[...]            # (TILE_N, HALF)
    cos_e = jnp.cos(args)
    sin_e = jnp.sin(args)

    # --- Linear(256 -> 32): split matmul, no concat of [cos, sin] ---
    # w1 is stored (in_features, out_features); static sublane slices are free.
    h = (jnp.dot(cos_e, w1_ref[:HALF, :], preferred_element_type=jnp.float32)
         + jnp.dot(sin_e, w1_ref[HALF:, :], preferred_element_type=jnp.float32)
         + b1_ref[...])                  # (TILE_N, HIDDEN)

    # --- SiLU ---
    h = h * jax.nn.sigmoid(h)

    # --- Linear(32 -> 32), stored straight to the (TILE_N, 32) output block ---
    out_ref[...] = (jnp.dot(h, w2_ref[...], preferred_element_type=jnp.float32)
                    + b2_ref[...]).astype(out_ref.dtype)


def time_embedding_forward(t, w1, b1, w2, b2, *, tile_n=DEFAULT_TILE_N,
                           out_dtype=jnp.float32):
    """t: (N,) f32 timesteps (possibly fractional). Returns (N, HIDDEN) out_dtype."""
    if t.ndim == 0:
        t = t[None]
    n = t.shape[0]

    # Round the tile cap up to a multiple of 8 (sublane constraint).
    tile_n = max(8, ((int(tile_n) + 7) // 8) * 8)
    n8 = max(8, ((n + 7) // 8) * 8)

    if n8 <= tile_n:
        # Whole batch fits in one tile: split it in two (rounded up to 8 rows)
        # so the "parallel" batch axis shards across v7x's two TensorCores.
        tn = max(8, (((n8 + 1) // 2 + 7) // 8) * 8)
    else:
        tn = tile_n
    n_pad = ((n + tn - 1) // tn) * tn
    grid = (n_pad // tn,)

    # Host-side prep (cheap, done once per call).
    t2 = jnp.zeros((n_pad, 1), jnp.float32).at[:n, 0].set(t.astype(jnp.float32))
    freqs = jnp.exp(
        -math.log(MAX_PERIOD) * jnp.arange(HALF, dtype=jnp.float32) / HALF
    ).reshape(1, HALF)
    w1_f = w1.astype(jnp.float32)
    b1_2d = b1.reshape(1, HIDDEN).astype(jnp.float32)
    w2_f = w2.astype(jnp.float32)
    b2_2d = b2.reshape(1, HIDDEN).astype(jnp.float32)

    # Advisory cost estimate so XLA schedules/overlaps this small call well.
    itemsize_out = jnp.dtype(out_dtype).itemsize
    cost = pl.CostEstimate(
        flops=n_pad * (2 * FREQ_DIM * HIDDEN + 2 * HIDDEN * HIDDEN),
        transcendentals=n_pad * (2 * HALF + HIDDEN),
        bytes_accessed=(n_pad * 4                      # t
                        + HALF * 4                     # freqs
                        + FREQ_DIM * HIDDEN * 4        # w1
                        + HIDDEN * 4                   # b1
                        + HIDDEN * HIDDEN * 4          # w2
                        + HIDDEN * 4                   # b2
                        + n_pad * HIDDEN * itemsize_out))  # output

    out = pl.pallas_call(
        time_embedding_kernel,
        out_shape=jax.ShapeDtypeStruct((n_pad, HIDDEN), out_dtype),
        grid=grid,
        in_specs=[
            pl.BlockSpec((tn, 1), lambda i: (i, 0)),             # t
            pl.BlockSpec((1, HALF), lambda i: (0, 0)),           # freqs
            pl.BlockSpec((FREQ_DIM, HIDDEN), lambda i: (0, 0)),  # w1
            pl.BlockSpec((1, HIDDEN), lambda i: (0, 0)),         # b1
            pl.BlockSpec((HIDDEN, HIDDEN), lambda i: (0, 0)),    # w2
            pl.BlockSpec((1, HIDDEN), lambda i: (0, 0)),         # b2
        ],
        out_specs=pl.BlockSpec((tn, HIDDEN), lambda i: (i, 0)),
        compiler_params=pltpu.CompilerParams(
            dimension_semantics=("parallel",)),
        cost_estimate=cost,
    )(t2, freqs, w1_f, b1_2d, w2_f, b2_2d)

    if n_pad != n:
        out = out[:n]
    return out


def reference_forward(t, w1, b1, w2, b2):
    """Pure-JAX reference mirroring the PyTorch module."""
    if t.ndim == 0:
        t = t[None]
    freqs = jnp.exp(-math.log(MAX_PERIOD)
                    * jnp.arange(HALF, dtype=jnp.float32) / HALF)
    args = t.astype(jnp.float32)[:, None] * freqs[None]
    emb = jnp.concatenate([jnp.cos(args), jnp.sin(args)], axis=-1)
    h = emb @ w1 + b1
    h = h * jax.nn.sigmoid(h)
    return h @ w2 + b2


if __name__ == "__main__":
    key = jax.random.PRNGKey(0)
    k_t, k_w1, k_b1, k_w2, k_b2 = jax.random.split(key, 5)

    # Deterministic synthetic parameters (PyTorch-Linear-like uniform init),
    # stored as (in_features, out_features) so the kernel computes x @ W + b.
    lim1 = 1.0 / math.sqrt(FREQ_DIM)
    lim2 = 1.0 / math.sqrt(HIDDEN)
    w1 = jax.random.uniform(k_w1, (FREQ_DIM, HIDDEN), jnp.float32, -lim1, lim1)
    b1 = jax.random.uniform(k_b1, (HIDDEN,), jnp.float32, -lim1, lim1)
    w2 = jax.random.uniform(k_w2, (HIDDEN, HIDDEN), jnp.float32, -lim2, lim2)
    b2 = jax.random.uniform(k_b2, (HIDDEN,), jnp.float32, -lim2, lim2)

    # Example input: batch of 8 (possibly fractional) timesteps.
    t = jax.random.uniform(k_t, (8,), jnp.float32, 0.0, 1000.0)

    out = time_embedding_forward(t, w1, b1, w2, b2)
    out = jax.block_until_ready(out)
    ref = reference_forward(t, w1, b1, w2, b2)
    assert out.shape == (8, HIDDEN)
    assert jnp.allclose(out, ref, atol=1e-4, rtol=1e-4)

    # Also exercise the multi-tile / megacore path (grid >= 2, non-multiple N).
    t_big = jax.random.uniform(jax.random.PRNGKey(1), (2500,), jnp.float32, 0.0, 1000.0)
    out_big = jax.block_until_ready(
        time_embedding_forward(t_big, w1, b1, w2, b2, tile_n=2048))
    ref_big = reference_forward(t_big, w1, b1, w2, b2)
    assert out_big.shape == (2500, HIDDEN)
    assert jnp.allclose(out_big, ref_big, atol=1e-4, rtol=1e-4)

    # Optional bf16 output path (compute stays f32; only the store is cast).
    out_bf16 = jax.block_until_ready(
        time_embedding_forward(t, w1, b1, w2, b2, out_dtype=jnp.bfloat16))
    assert out_bf16.dtype == jnp.bfloat16
    assert jnp.allclose(out_bf16.astype(jnp.float32), ref, atol=2e-2, rtol=2e-2)

    print("KERNEL_OK")
</pallas_src>

<mosaic_0001>
module attributes {stable_mosaic.version = 11 : i64} {
  func.func @time_embedding_kernel(%arg0: i32, %arg1: memref<8x1xf32, #tpu.memory_space<vmem>>, %arg2: memref<1x128xf32, #tpu.memory_space<vmem>>, %arg3: memref<256x32xf32, #tpu.memory_space<vmem>>, %arg4: memref<1x32xf32, #tpu.memory_space<vmem>>, %arg5: memref<32x32xf32, #tpu.memory_space<vmem>>, %arg6: memref<1x32xf32, #tpu.memory_space<vmem>>, %arg7: memref<8x32xf32, #tpu.memory_space<vmem>>) attributes {dimension_semantics = [#tpu.dimension_semantics<parallel>], iteration_bounds = array<i64: 1>, scalar_prefetch = 0 : i64, scratch_operands = 0 : i64, tpu.core_type = #tpu.core_type<tc>, window_params = [{transform_indices = @transform_0, window_bounds = array<i64: 8, 1>}, {pipeline_mode = #tpu.pipeline_mode<synchronous>, transform_indices = @transform_1, window_bounds = array<i64: 1, 128>}, {pipeline_mode = #tpu.pipeline_mode<synchronous>, transform_indices = @transform_2, window_bounds = array<i64: 256, 32>}, {pipeline_mode = #tpu.pipeline_mode<synchronous>, transform_indices = @transform_3, window_bounds = array<i64: 1, 32>}, {pipeline_mode = #tpu.pipeline_mode<synchronous>, transform_indices = @transform_4, window_bounds = array<i64: 32, 32>}, {pipeline_mode = #tpu.pipeline_mode<synchronous>, transform_indices = @transform_5, window_bounds = array<i64: 1, 32>}, {transform_indices = @transform_6, window_bounds = array<i64: 8, 32>}]} {
    %c0 = arith.constant 0 : index
    %c0_0 = arith.constant 0 : index
    %0 = vector.load %arg1[%c0, %c0_0] : memref<8x1xf32, #tpu.memory_space<vmem>>, vector<8x1xf32>
    %c0_1 = arith.constant 0 : index
    %c0_2 = arith.constant 0 : index
    %1 = vector.load %arg2[%c0_1, %c0_2] : memref<1x128xf32, #tpu.memory_space<vmem>>, vector<1x128xf32>
    %2 = vector.broadcast %0 : vector<8x1xf32> to vector<8x128xf32>
    %3 = vector.broadcast %1 : vector<1x128xf32> to vector<8x128xf32>
    %4 = arith.mulf %2, %3 : vector<8x128xf32>
    %5 = math.cos %4 : vector<8x128xf32>
    %6 = math.sin %4 : vector<8x128xf32>
    %c0_3 = arith.constant 0 : index
    %c0_4 = arith.constant 0 : index
    %7 = vector.load %arg3[%c0_3, %c0_4] : memref<256x32xf32, #tpu.memory_space<vmem>>, vector<128x32xf32>
    %cst = arith.constant dense<0.000000e+00> : vector<8x32xf32>
    %8 = tpu.matmul %5, %7, %cst {dimension_numbers = #tpu.dot_dimension_numbers<[1], [0], [0], [1], [0, 0, 1, 1], [], []>} : vector<8x128xf32>, vector<128x32xf32>, vector<8x32xf32> -> vector<8x32xf32>
    %c128 = arith.constant 128 : index
    %c0_5 = arith.constant 0 : index
    %9 = vector.load %arg3[%c128, %c0_5] : memref<256x32xf32, #tpu.memory_space<vmem>>, vector<128x32xf32>
    %cst_6 = arith.constant dense<0.000000e+00> : vector<8x32xf32>
    %10 = tpu.matmul %6, %9, %cst_6 {dimension_numbers = #tpu.dot_dimension_numbers<[1], [0], [0], [1], [0, 0, 1, 1], [], []>} : vector<8x128xf32>, vector<128x32xf32>, vector<8x32xf32> -> vector<8x32xf32>
    %11 = arith.addf %8, %10 : vector<8x32xf32>
    %c0_7 = arith.constant 0 : index
    %c0_8 = arith.constant 0 : index
    %12 = vector.load %arg4[%c0_7, %c0_8] : memref<1x32xf32, #tpu.memory_space<vmem>>, vector<1x32xf32>
    %13 = vector.broadcast %12 : vector<1x32xf32> to vector<8x32xf32>
    %14 = arith.addf %11, %13 : vector<8x32xf32>
    %15 = arith.negf %14 : vector<8x32xf32>
    %16 = math.exp %15 : vector<8x32xf32>
    %cst_9 = arith.constant 1.000000e+00 : f32
    %17 = vector.broadcast %cst_9 : f32 to vector<8x32xf32>
    %18 = arith.addf %17, %16 : vector<8x32xf32>
    %19 = arith.divf %17, %18 : vector<8x32xf32>
    %20 = arith.mulf %14, %19 : vector<8x32xf32>
    %c0_10 = arith.constant 0 : index
    %c0_11 = arith.constant 0 : index
    %21 = vector.load %arg5[%c0_10, %c0_11] : memref<32x32xf32, #tpu.memory_space<vmem>>, vector<32x32xf32>
    %cst_12 = arith.constant dense<0.000000e+00> : vector<8x32xf32>
    %22 = tpu.matmul %20, %21, %cst_12 {dimension_numbers = #tpu.dot_dimension_numbers<[1], [0], [0], [1], [0, 0, 1, 1], [], []>} : vector<8x32xf32>, vector<32x32xf32>, vector<8x32xf32> -> vector<8x32xf32>
    %c0_13 = arith.constant 0 : index
    %c0_14 = arith.constant 0 : index
    %23 = vector.load %arg6[%c0_13, %c0_14] : memref<1x32xf32, #tpu.memory_space<vmem>>, vector<1x32xf32>
    %24 = vector.broadcast %23 : vector<1x32xf32> to vector<8x32xf32>
    %25 = arith.addf %22, %24 : vector<8x32xf32>
    %c0_15 = arith.constant 0 : index
    %c0_16 = arith.constant 0 : index
    %26 = vector.load %arg7[%c0_15, %c0_16] : memref<8x32xf32, #tpu.memory_space<vmem>>, vector<8x32xf32>
    tpu.vector_store %arg7[%c0_15, %c0_16], %25 {strides = array<i32>} : memref<8x32xf32, #tpu.memory_space<vmem>>, vector<8x32xf32>,
    return
  }
  func.func @transform_0(%arg0: i32) -> (i32, i32) {
    %c0_i32 = arith.constant 0 : i32
    %c0_i32_0 = arith.constant 0 : i32
    return %arg0, %c0_i32 : i32, i32
  }
  func.func @transform_1(%arg0: i32) -> (i32, i32) {
    %c0_i32 = arith.constant 0 : i32
    %c0_i32_0 = arith.constant 0 : i32
    %c0_i32_1 = arith.constant 0 : i32
    return %c0_i32, %c0_i32_0 : i32, i32
  }
  func.func @transform_2(%arg0: i32) -> (i32, i32) {
    %c0_i32 = arith.constant 0 : i32
    %c0_i32_0 = arith.constant 0 : i32
    %c0_i32_1 = arith.constant 0 : i32
    return %c0_i32, %c0_i32_0 : i32, i32
  }
  func.func @transform_3(%arg0: i32) -> (i32, i32) {
    %c0_i32 = arith.constant 0 : i32
    %c0_i32_0 = arith.constant 0 : i32
    %c0_i32_1 = arith.constant 0 : i32
    return %c0_i32, %c0_i32_0 : i32, i32
  }
  func.func @transform_4(%arg0: i32) -> (i32, i32) {
    %c0_i32 = arith.constant 0 : i32
    %c0_i32_0 = arith.constant 0 : i32
    %c0_i32_1 = arith.constant 0 : i32
    return %c0_i32, %c0_i32_0 : i32, i32
  }
  func.func @transform_5(%arg0: i32) -> (i32, i32) {
    %c0_i32 = arith.constant 0 : i32
    %c0_i32_0 = arith.constant 0 : i32
    %c0_i32_1 = arith.constant 0 : i32
    return %c0_i32, %c0_i32_0 : i32, i32
  }
  func.func @transform_6(%arg0: i32) -> (i32, i32) {
    %c0_i32 = arith.constant 0 : i32
    %c0_i32_0 = arith.constant 0 : i32
    return %arg0, %c0_i32 : i32, i32
  }
}

</mosaic_0001>

<llo_original>
// kernel: tpu_custom_call.1
$region0: #{tpu_custom_call.1}
  #allocation0 [shape = 'u32[]', space=smem, size = 0x4, offset = 0x4, fixed_abs, tag = 'smem constant byte address 0x4 - core index']
  #allocation1 [shape = 'u32[144,128]{1,0:T(1,128)}', space=vmem, size = 0x12000, scoped, tag = 'internal scratch']
  %s0 = inlined_call_operand.vmem [shape: f32[8,1], index: 0, kind: input, shape index: {}]
  %s1 = inlined_call_operand.vmem [shape: f32[1,128], index: 1, kind: input, shape index: {}]
  %s2 = inlined_call_operand.vmem [shape: f32[256,32], index: 2, kind: input, shape index: {}]
  %s3 = inlined_call_operand.vmem [shape: f32[1,32], index: 3, kind: input, shape index: {}]
  %s4 = inlined_call_operand.vmem [shape: f32[32,32], index: 4, kind: input, shape index: {}]
  %s5 = inlined_call_operand.vmem [shape: f32[1,32], index: 5, kind: input, shape index: {}]
  %s6 = inlined_call_operand.hbm [shape: f32[8,32], index: 6, kind: output, shape index: {}]
  %s7 = sld [smem:[#allocation0]]
  $region34: #{tpu_custom_call.1} parent=0
    _
  %s9 = ssub.s32 1, %s7
  %s10 = scalar_select 0, %s9, %s7
  $region1: #{tpu_custom_call.1} parent=0
    #allocation2 [shape = 'u8[4096]{0}', space=vmem, size = 0x1000, scoped, tag = 'output window, operand 0, single buffered']
    #allocation3 [shape = 's32[1]{0}', space=sflag, size = 0x4, scoped, tag = 'scoped memory for tpu_custom_call.1']
    %11 = vsyncpa [#allocation3], 0
    // Predicated region
    $region2: #{tpu_custom_call.1} parent=1 // pred_check
      _
    $region3: #{tpu_custom_call.1} parent=1 // pred_check_branch
      %13 = sbr.rel (0) target = $region5
    $region4: #{tpu_custom_call.1} parent=1 // pred_region
      _
    $region5: #{tpu_custom_call.1} parent=1 // pred_fallthru
      _
    // Predicated region
    $region6: #{tpu_custom_call.1} parent=1 // pred_check
      _
    $region7: #{tpu_custom_call.1} parent=1 // pred_check_branch
      %15 = sbr.rel (0) target = $region9
    $region8: #{tpu_custom_call.1} parent=1 // pred_region
      _
    $region9: #{tpu_custom_call.1} parent=1 // pred_fallthru
      _
    // Predicated region
    $region10: #{tpu_custom_call.1} parent=1 // pred_check
      _
    $region11: #{tpu_custom_call.1} parent=1 // pred_check_branch
      %17 = sbr.rel (0) target = $region13
    $region12: #{tpu_custom_call.1} parent=1 // pred_region
      _
    $region13: #{tpu_custom_call.1} parent=1 // pred_fallthru
      _
    // Predicated region
    $region14: #{tpu_custom_call.1} parent=1 // pred_check
      _
    $region15: #{tpu_custom_call.1} parent=1 // pred_check_branch
      %19 = sbr.rel (0) target = $region17
    $region16: #{tpu_custom_call.1} parent=1 // pred_region
      _
    $region17: #{tpu_custom_call.1} parent=1 // pred_fallthru
      _
    // Predicated region
    $region18: #{tpu_custom_call.1} parent=1 // pred_check
      _
    $region19: #{tpu_custom_call.1} parent=1 // pred_check_branch
      %21 = sbr.rel (0) target = $region21
    $region20: #{tpu_custom_call.1} parent=1 // pred_region
      _
    $region21: #{tpu_custom_call.1} parent=1 // pred_fallthru
      _
    // Predicated region
    $region22: #{tpu_custom_call.1} parent=1 // pred_check
      _
    $region23: #{tpu_custom_call.1} parent=1 // pred_check_branch
      %23 = sbr.rel (0) target = $region25
    $region24: #{tpu_custom_call.1} parent=1 // pred_region
      _
    $region25: #{tpu_custom_call.1} parent=1 // pred_fallthru
      _
    %v24 = vld [vmem:[%s0] sm:$0xff]
    %v25 = vld [vmem:[%s1] sm:$0x1]
    %27 = vset.pattern.permute.xlu0 0
    %28 = vperm.xlu0 %27, %v24
    %v29 = vpop.permute.xlu0 %28
    %v32 = vlaneseq
    %v33 = vshrl.u32 %v32, 7
    %v34 = vsub.s32 0, %v33
    %v35 = vrot.slane %v25, %v34
    %v37 = vmul.f32 %v29, %v35
    %v38 = vand.u32 2147483647, %v37
    %vm39 = vcmp.le.f32.partialorder %v38, 0.7853982
    %vm40 = vcmp.lt.s32.totalorder %v37, 0
    %v41 = vand.u32 %v37, 2139095040
    %v42 = vshrl.u32 %v41, 23
    %v43 = vsub.s32 %v42, 127
    %v44 = vand.u32 2147483647, %v37
    %v45 = vand.u32 %v44, 8388607
    %v46 = vor.u32 %v45, 8388608
    %v47 = vsub.s32 0, %v46
    %v48 = vadd.s32 %v43, 1
    %vm49 = vcmp.gt.s32.totalorder %v48, 0
    %v50 = vsel %vm49, %v48, 0
    %v51 = vshrl.u32 %v50, 5
    %v52 = vand.u32 %v50, 31
    %v53 = vsub.s32 32, %v52
    %v54 = vshrl.u32 683565275, %v53
    %v55 = vshll.u32 683565275, %v52
    %v56 = vshrl.u32 2475754826, %v53
    %v57 = vor.u32 %v55, %v56
    %v58 = vshll.u32 2475754826, %v52
    %v59 = vshrl.u32 2131351028, %v53
    %v60 = vor.u32 %v58, %v59
    %v61 = vshll.u32 2131351028, %v52
    %v62 = vshrl.u32 2102212464, %v53
    %v63 = vor.u32 %v61, %v62
    %v64 = vshll.u32 2102212464, %v52
    %v65 = vshrl.u32 920167782, %v53
    %v66 = vor.u32 %v64, %v65
    %v67 = vshll.u32 920167782, %v52
    %v68 = vshrl.u32 1326507024, %v53
    %v69 = vor.u32 %v67, %v68
    %vm70 = vcmp.lt.s32.totalorder %v51, 1
    %vm71 = vcmp.lt.s32.totalorder %v51, 2
    %vm72 = vcmp.lt.s32.totalorder %v51, 3
    %vm73 = vcmp.lt.s32.totalorder %v51, 4
    %v74 = vsel %vm70, %v54, %v57
    %v75 = vsel %vm73, %v63, 2102212464
    %v76 = vsel %vm72, %v60, %v75
    %v77 = vsel %vm71, %v74, %v76
    %v78 = vsel %vm70, %v57, %v60
    %v79 = vsel %vm73, %v66, 920167782
    %v80 = vsel %vm72, %v63, %v79
    %v81 = vsel %vm71, %v78, %v80
    %v82 = vsel %vm70, %v60, %v63
    %v83 = vsel %vm73, %v69, 1326507024
    %v84 = vsel %vm72, %v66, %v83
    %v85 = vsel %vm71, %v82, %v84
    %v86 = vshll.u32 %v46, 8
    %v87 = vmul.u32.u64.compose %v86, %v85
    %v88 = vextract.low.u32 %v87
    %v89 = vextract.high.u32 %v87
    %v90 = vmul.u32.u64.compose %v86, %v81
    %v91 = vextract.low.u32 %v90
    %v92 = vextract.high.u32 %v90
    %v93 = vmul.u32 %v86, %v77
    %v94 = vadd.s32 %v89, %v91
    %vm95 = vc.u32 %v89, %v91
    %v96 = vadd.s32 %v92, 1
    %v97 = vsel %vm95, %v96, %v92
    %v98 = vadd.s32 %v93, %v97
    %v99 = vadd.s32 %v98, 536870912
    %v100 = vshrl.u32 %v99, 30
    %v101 = vshll.u32 %v100, 30
    %v102 = vsub.s32 %v98, %v101
    %vm103 = vcmp.lt.s32.totalorder %v102, 0
    %v104 = vsub.s32 0, %v102
    %v105 = vsel %vm103, %v104, %v102
    %v106 = vclz %v105
    %v107 = vsub.s32 %v106, 2
    %vm108 = vcmp.gt.s32.totalorder 0, %v107
    %v109 = vsel %vm108, 0, %v107
    %v110 = vsub.s32 32, %v109
    %v111 = vshll.u32 %v102, %v109
    %v112 = vshrl.u32 %v94, %v110
    %v113 = vor.u32 %v111, %v112
    %v114 = vsub.s32 4294967266, %v109
    %v115 = vadd.s32 %v114, 127
    %v116 = vshll.u32 %v115, 23
    %v117 = vor.u32 4788187, %v116
    %v118 = vand.u32 2147483647, %v117
    %v120 = vcvt.s32.f32 %v113
    %v121 = vmul.f32 %v120, %v118
    %v122 = vxor.u32 %v121, 2147483648
    %v123 = vsel %vm40, %v122, %v121
    %v124 = vsub.s32 4, %v100
    %v125 = vsel %vm40, %v124, %v100
    %v126 = vsel %vm39, %v37, %v123
    %v127 = vsel %vm39, 0, %v125
    %v128 = vcosq.f32.pop %v126
    %v129 = vsinq.f32.pop %v126
    %vm130 = vweird.f32 %v37
    %v131 = vand.u32 %v127, 3
    %vm132 = vcmp.lt.s32.totalorder %v131, 2
    %vm133 = vcmp.eq.s32.totalorder %v131, 0
    %v134 = vxor.u32 %v129, 2147483648
    %v135 = vsel %vm133, %v128, %v134
    %vm136 = vcmp.eq.s32.totalorder %v131, 2
    %v137 = vxor.u32 %v128, 2147483648
    %v138 = vsel %vm136, %v137, %v129
    %v139 = vsel %vm132, %v135, %v138
    %v140 = vsel %vm130, nan, %v139
    %v141 = vand.u32 2147483647, %v37
    %vm142 = vcmp.le.f32.partialorder %v141, 0.7853982
    %vm143 = vcmp.lt.s32.totalorder %v37, 0
    %v144 = vand.u32 %v37, 2139095040
    %v145 = vshrl.u32 %v144, 23
    %v146 = vsub.s32 %v145, 127
    %v147 = vand.u32 2147483647, %v37
    %v148 = vand.u32 %v147, 8388607
    %v149 = vor.u32 %v148, 8388608
    %v150 = vsub.s32 0, %v149
    %v151 = vadd.s32 %v146, 1
    %vm152 = vcmp.gt.s32.totalorder %v151, 0
    %v153 = vsel %vm152, %v151, 0
    %v154 = vshrl.u32 %v153, 5
    %v155 = vand.u32 %v153, 31
    %v156 = vsub.s32 32, %v155
    %v157 = vshrl.u32 683565275, %v156
    %v158 = vshll.u32 683565275, %v155
    %v159 = vshrl.u32 2475754826, %v156
    %v160 = vor.u32 %v158, %v159
    %v161 = vshll.u32 2475754826, %v155
    %v162 = vshrl.u32 2131351028, %v156
    %v163 = vor.u32 %v161, %v162
    %v164 = vshll.u32 2131351028, %v155
    %v165 = vshrl.u32 2102212464, %v156
    %v166 = vor.u32 %v164, %v165
    %v167 = vshll.u32 2102212464, %v155
    %v168 = vshrl.u32 920167782, %v156
    %v169 = vor.u32 %v167, %v168
    %v170 = vshll.u32 920167782, %v155
    %v171 = vshrl.u32 1326507024, %v156
    %v172 = vor.u32 %v170, %v171
    %vm173 = vcmp.lt.s32.totalorder %v154, 1
    %vm174 = vcmp.lt.s32.totalorder %v154, 2
    %vm175 = vcmp.lt.s32.totalorder %v154, 3
    %vm176 = vcmp.lt.s32.totalorder %v154, 4
    %v177 = vsel %vm173, %v157, %v160
    %v178 = vsel %vm176, %v166, 2102212464
    %v179 = vsel %vm175, %v163, %v178
    %v180 = vsel %vm174, %v177, %v179
    %v181 = vsel %vm173, %v160, %v163
    %v182 = vsel %vm176, %v169, 920167782
    %v183 = vsel %vm175, %v166, %v182
    %v184 = vsel %vm174, %v181, %v183
    %v185 = vsel %vm173, %v163, %v166
    %v186 = vsel %vm176, %v172, 1326507024
    %v187 = vsel %vm175, %v169, %v186
    %v188 = vsel %vm174, %v185, %v187
    %v189 = vshll.u32 %v149, 8
    %v190 = vmul.u32.u64.compose %v189, %v188
    %v191 = vextract.low.u32 %v190
    %v192 = vextract.high.u32 %v190
    %v193 = vmul.u32.u64.compose %v189, %v184
    %v194 = vextract.low.u32 %v193
    %v195 = vextract.high.u32 %v193
    %v196 = vmul.u32 %v189, %v180
    %v197 = vadd.s32 %v192, %v194
    %vm198 = vc.u32 %v192, %v194
    %v199 = vadd.s32 %v195, 1
    %v200 = vsel %vm198, %v199, %v195
    %v201 = vadd.s32 %v196, %v200
    %v202 = vadd.s32 %v201, 536870912
    %v203 = vshrl.u32 %v202, 30
    %v204 = vshll.u32 %v203, 30
    %v205 = vsub.s32 %v201, %v204
    %vm206 = vcmp.lt.s32.totalorder %v205, 0
    %v207 = vsub.s32 0, %v205
    %v208 = vsel %vm206, %v207, %v205
    %v209 = vclz %v208
    %v210 = vsub.s32 %v209, 2
    %vm211 = vcmp.gt.s32.totalorder 0, %v210
    %v212 = vsel %vm211, 0, %v210
    %v213 = vsub.s32 32, %v212
    %v214 = vshll.u32 %v205, %v212
    %v215 = vshrl.u32 %v197, %v213
    %v216 = vor.u32 %v214, %v215
    %v217 = vsub.s32 4294967266, %v212
    %v218 = vadd.s32 %v217, 127
    %v219 = vshll.u32 %v218, 23
    %v220 = vor.u32 4788187, %v219
    %v221 = vand.u32 2147483647, %v220
    %v223 = vcvt.s32.f32 %v216
    %v224 = vmul.f32 %v223, %v221
    %v225 = vxor.u32 %v224, 2147483648
    %v226 = vsel %vm143, %v225, %v224
    %v227 = vsub.s32 4, %v203
    %v228 = vsel %vm143, %v227, %v203
    %v229 = vsel %vm142, %v37, %v226
    %v230 = vsel %vm142, 0, %v228
    %v231 = vcosq.f32.pop %v229
    %v232 = vsinq.f32.pop %v229
    %vm233 = vweird.f32 %v37
    %v234 = vadd.s32 %v230, 3
    %v235 = vand.u32 %v234, 3
    %vm236 = vcmp.lt.s32.totalorder %v235, 2
    %vm237 = vcmp.eq.s32.totalorder %v235, 0
    %v238 = vxor.u32 %v232, 2147483648
    %v239 = vsel %vm237, %v231, %v238
    %vm240 = vcmp.eq.s32.totalorder %v235, 2
    %v241 = vxor.u32 %v231, 2147483648
    %v242 = vsel %vm240, %v241, %v232
    %v243 = vsel %vm236, %v239, %v242
    %v244 = vsel %vm233, nan, %v243
    %v245 = vld [vmem:[%s2] sm:$0xff]
    %v246 = vld [vmem:[%s2 + $0x8] sm:$0xff]
    %v247 = vld [vmem:[%s2 + $0x10] sm:$0xff]
    %v248 = vld [vmem:[%s2 + $0x18] sm:$0xff]
    %v249 = vld [vmem:[%s2 + $0x20] sm:$0xff]
    %v250 = vld [vmem:[%s2 + $0x28] sm:$0xff]
    %v251 = vld [vmem:[%s2 + $0x30] sm:$0xff]
    %v252 = vld [vmem:[%s2 + $0x38] sm:$0xff]
    %v253 = vld [vmem:[%s2 + $0x40] sm:$0xff]
    %v254 = vld [vmem:[%s2 + $0x48] sm:$0xff]
    %v255 = vld [vmem:[%s2 + $0x50] sm:$0xff]
    %v256 = vld [vmem:[%s2 + $0x58] sm:$0xff]
    %v257 = vld [vmem:[%s2 + $0x60] sm:$0xff]
    %v258 = vld [vmem:[%s2 + $0x68] sm:$0xff]
    %v259 = vld [vmem:[%s2 + $0x70] sm:$0xff]
    %v260 = vld [vmem:[%s2 + $0x78] sm:$0xff]
    %v261 = vld [vmem:[%s2 + $0x80] sm:$0xff]
    %v262 = vld [vmem:[%s2 + $0x88] sm:$0xff]
    %v263 = vld [vmem:[%s2 + $0x90] sm:$0xff]
    %v264 = vld [vmem:[%s2 + $0x98] sm:$0xff]
    %v265 = vld [vmem:[%s2 + $0xa0] sm:$0xff]
    %v266 = vld [vmem:[%s2 + $0xa8] sm:$0xff]
    %v267 = vld [vmem:[%s2 + $0xb0] sm:$0xff]
    %v268 = vld [vmem:[%s2 + $0xb8] sm:$0xff]
    %v269 = vld [vmem:[%s2 + $0xc0] sm:$0xff]
    %v270 = vld [vmem:[%s2 + $0xc8] sm:$0xff]
    %v271 = vld [vmem:[%s2 + $0xd0] sm:$0xff]
    %v272 = vld [vmem:[%s2 + $0xd8] sm:$0xff]
    %v273 = vld [vmem:[%s2 + $0xe0] sm:$0xff]
    %v274 = vld [vmem:[%s2 + $0xe8] sm:$0xff]
    %v275 = vld [vmem:[%s2 + $0xf0] sm:$0xff]
    %v276 = vld [vmem:[%s2 + $0xf8] sm:$0xff]
    %277 = vmatprep.subr.mxu0 0.0
    %278 = vmatpush1.msra.mxu0 %v261
    %279 = vmatprep.subr.mxu0 0.0
    %280 = vmatpush1.msra.mxu0 %v262
    %281 = vmatprep.subr.mxu0 0.0
    %282 = vmatpush1.msra.mxu0 %v263
    %283 = vmatprep.subr.mxu0 0.0
    %284 = vmatpush1.msra.mxu0 %v264
    %285 = vmatprep.subr.mxu0 0.0
    %286 = vmatpush1.msra.mxu0 %v265
    %287 = vmatprep.subr.mxu0 0.0
    %288 = vmatpush1.msra.mxu0 %v266
    %289 = vmatprep.subr.mxu0 0.0
    %290 = vmatpush1.msra.mxu0 %v267
    %291 = vmatprep.subr.mxu0 0.0
    %292 = vmatpush1.msra.mxu0 %v268
    %293 = vmatprep.subr.mxu0 0.0
    %294 = vmatpush1.msra.mxu0 %v269
    %295 = vmatprep.subr.mxu0 0.0
    %296 = vmatpush1.msra.mxu0 %v270
    %297 = vmatprep.subr.mxu0 0.0
    %298 = vmatpush1.msra.mxu0 %v271
    %299 = vmatprep.subr.mxu0 0.0
    %300 = vmatpush1.msra.mxu0 %v272
    %301 = vmatprep.subr.mxu0 0.0
    %302 = vmatpush1.msra.mxu0 %v273
    %303 = vmatprep.subr.mxu0 0.0
    %304 = vmatpush1.msra.mxu0 %v274
    %305 = vmatprep.subr.mxu0 0.0
    %306 = vmatpush1.msra.mxu0 %v275
    %307 = vmatprep.subr.mxu0 0.0
    %308 = vmatpush1.msra.mxu0 %v276
    %309 = vmatprep.subr.mxu0 0.0
    %310 = vmatpush1.msra.mxu0 0.0
    %311 = vmatprep.subr.mxu0 0.0
    %312 = vmatpush1.msra.mxu0 0.0
    %313 = vmatprep.subr.mxu0 0.0
    %314 = vmatpush1.msra.mxu0 0.0
    %315 = vmatprep.subr.mxu0 0.0
    %316 = vmatpush1.msra.mxu0 0.0
    %317 = vmatprep.subr.mxu0 0.0
    %318 = vmatpush1.msra.mxu0 0.0
    %319 = vmatprep.subr.mxu0 0.0
    %320 = vmatpush1.msra.mxu0 0.0
    %321 = vmatprep.subr.mxu0 0.0
    %322 = vmatpush1.msra.mxu0 0.0
    %323 = vmatprep.subr.mxu0 0.0
    %324 = vmatpush1.msra.mxu0 0.0
    %325 = vmatprep.subr.mxu0 0.0
    %326 = vmatpush1.msra.mxu0 0.0
    %327 = vmatprep.subr.mxu0 0.0
    %328 = vmatpush1.msra.mxu0 0.0
    %329 = vmatprep.subr.mxu0 0.0
    %330 = vmatpush1.msra.mxu0 0.0
    %331 = vmatprep.subr.mxu0 0.0
    %332 = vmatpush1.msra.mxu0 0.0
    %333 = vmatprep.subr.mxu0 0.0
    %334 = vmatpush1.msra.mxu0 0.0
    %335 = vmatprep.subr.mxu0 0.0
    %336 = vmatpush1.msra.mxu0 0.0
    %337 = vmatprep.subr.mxu0 0.0
    %338 = vmatpush1.msra.mxu0 0.0
    %339 = vmatprep.subr.mxu0 0.0
    %340 = vmatpush1.msra.mxu0 0.0
    %341 = vmatprep.mubr.f32.mxu0 0.0
    %342 = vmatmul.mubr.f32.gmra.mrb[0].mxu0 %v244
    %v343 = vpop.f32.mrb[0].mxu0
    %v344 = vadd.f32 0.0, %v343
    %v345 = vpop.f32.mrb[0].mxu0
    %346 = vdwg.mxu0
    %347 = vmatprep.subr.mxu0 0.0
    %348 = vmatpush1.msra.mxu0 %v245
    %349 = vmatprep.subr.mxu0 0.0
    %350 = vmatpush1.msra.mxu0 %v246
    %351 = vmatprep.subr.mxu0 0.0
    %352 = vmatpush1.msra.mxu0 %v247
    %353 = vmatprep.subr.mxu0 0.0
    %354 = vmatpush1.msra.mxu0 %v248
    %355 = vmatprep.subr.mxu0 0.0
    %356 = vmatpush1.msra.mxu0 %v249
    %357 = vmatprep.subr.mxu0 0.0
    %358 = vmatpush1.msra.mxu0 %v250
    %359 = vmatprep.subr.mxu0 0.0
    %360 = vmatpush1.msra.mxu0 %v251
    %361 = vmatprep.subr.mxu0 0.0
    %362 = vmatpush1.msra.mxu0 %v252
    %363 = vmatprep.subr.mxu0 0.0
    %364 = vmatpush1.msra.mxu0 %v253
    %365 = vmatprep.subr.mxu0 0.0
    %366 = vmatpush1.msra.mxu0 %v254
    %367 = vmatprep.subr.mxu0 0.0
    %368 = vmatpush1.msra.mxu0 %v255
    %369 = vmatprep.subr.mxu0 0.0
    %370 = vmatpush1.msra.mxu0 %v256
    %371 = vmatprep.subr.mxu0 0.0
    %372 = vmatpush1.msra.mxu0 %v257
    %373 = vmatprep.subr.mxu0 0.0
    %374 = vmatpush1.msra.mxu0 %v258
    %375 = vmatprep.subr.mxu0 0.0
    %376 = vmatpush1.msra.mxu0 %v259
    %377 = vmatprep.subr.mxu0 0.0
    %378 = vmatpush1.msra.mxu0 %v260
    %379 = vmatprep.subr.mxu0 0.0
    %380 = vmatpush1.msra.mxu0 0.0
    %381 = vmatprep.subr.mxu0 0.0
    %382 = vmatpush1.msra.mxu0 0.0
    %383 = vmatprep.subr.mxu0 0.0
    %384 = vmatpush1.msra.mxu0 0.0
    %385 = vmatprep.subr.mxu0 0.0
    %386 = vmatpush1.msra.mxu0 0.0
    %387 = vmatprep.subr.mxu0 0.0
    %388 = vmatpush1.msra.mxu0 0.0
    %389 = vmatprep.subr.mxu0 0.0
    %390 = vmatpush1.msra.mxu0 0.0
    %391 = vmatprep.subr.mxu0 0.0
    %392 = vmatpush1.msra.mxu0 0.0
    %393 = vmatprep.subr.mxu0 0.0
    %394 = vmatpush1.msra.mxu0 0.0
    %395 = vmatprep.subr.mxu0 0.0
    %396 = vmatpush1.msra.mxu0 0.0
    %397 = vmatprep.subr.mxu0 0.0
    %398 = vmatpush1.msra.mxu0 0.0
    %399 = vmatprep.subr.mxu0 0.0
    %400 = vmatpush1.msra.mxu0 0.0
    %401 = vmatprep.subr.mxu0 0.0
    %402 = vmatpush1.msra.mxu0 0.0
    %403 = vmatprep.subr.mxu0 0.0
    %404 = vmatpush1.msra.mxu0 0.0
    %405 = vmatprep.subr.mxu0 0.0
    %406 = vmatpush1.msra.mxu0 0.0
    %407 = vmatprep.subr.mxu0 0.0
    %408 = vmatpush1.msra.mxu0 0.0
    %409 = vmatprep.subr.mxu0 0.0
    %410 = vmatpush1.msra.mxu0 0.0
    %411 = vmatprep.mubr.f32.mxu0 0.0
    %412 = vmatmul.mubr.f32.gmra.mrb[0].mxu0 %v140
    %v413 = vpop.f32.mrb[0].mxu0
    %v414 = vadd.f32 %v344, %v413
    %v415 = vpop.f32.mrb[0].mxu0
    %416 = vdwg.mxu0
    %v417 = vld [vmem:[%s3] sm:$0x1]
    %v419 = vlaneseq
    %v420 = vshrl.u32 %v419, 7
    %v421 = vsub.s32 0, %v420
    %v422 = vrot.slane %v417, %v421
    %v424 = vadd.f32 %v414, %v422
    %v425 = vxor.u32 %v424, 2147483648
    %v426 = vmul.f32 %v425, 1.442695
    %v427 = vpow.pop %v426
    %v428 = vadd.f32 %v427, 1.0
    %v429 = vrcp.pop %v428
    %v430 = vmul.f32 1.0, %v429
    %v431 = vmul.f32 %v424, %v430
    %v432 = vld [vmem:[%s4] sm:$0xff]
    %v433 = vld [vmem:[%s4 + $0x8] sm:$0xff]
    %v434 = vld [vmem:[%s4 + $0x10] sm:$0xff]
    %v435 = vld [vmem:[%s4 + $0x18] sm:$0xff]
    %v436 = vld [vmem:[%s5] sm:$0x1]
    %v438 = vlaneseq
    %v439 = vshrl.u32 %v438, 7
    %v440 = vsub.s32 0, %v439
    %v441 = vrot.slane %v436, %v440
    %vm443 = vcmask 261120
    %v445 = vsel %vm443, %v431, 0
    %447 = vmatprep.subr.mxu0 0.0
    %448 = vmatpush1.msra.mxu0 %v432
    %449 = vmatprep.subr.mxu0 0.0
    %450 = vmatpush1.msra.mxu0 %v433
    %451 = vmatprep.subr.mxu0 0.0
    %452 = vmatpush1.msra.mxu0 %v434
    %453 = vmatprep.subr.mxu0 0.0
    %454 = vmatpush1.msra.mxu0 %v435
    %455 = vmatprep.subr.mxu0 0.0
    %456 = vmatpush1.msra.mxu0 0.0
    %457 = vmatprep.subr.mxu0 0.0
    %458 = vmatpush1.msra.mxu0 0.0
    %459 = vmatprep.subr.mxu0 0.0
    %460 = vmatpush1.msra.mxu0 0.0
    %461 = vmatprep.subr.mxu0 0.0
    %462 = vmatpush1.msra.mxu0 0.0
    %463 = vmatprep.subr.mxu0 0.0
    %464 = vmatpush1.msra.mxu0 0.0
    %465 = vmatprep.subr.mxu0 0.0
    %466 = vmatpush1.msra.mxu0 0.0
    %467 = vmatprep.subr.mxu0 0.0
    %468 = vmatpush1.msra.mxu0 0.0
    %469 = vmatprep.subr.mxu0 0.0
    %470 = vmatpush1.msra.mxu0 0.0
    %471 = vmatprep.subr.mxu0 0.0
    %472 = vmatpush1.msra.mxu0 0.0
    %473 = vmatprep.subr.mxu0 0.0
    %474 = vmatpush1.msra.mxu0 0.0
    %475 = vmatprep.subr.mxu0 0.0
    %476 = vmatpush1.msra.mxu0 0.0
    %477 = vmatprep.subr.mxu0 0.0
    %478 = vmatpush1.msra.mxu0 0.0
    %479 = vmatprep.subr.mxu0 0.0
    %480 = vmatpush1.msra.mxu0 0.0
    %481 = vmatprep.subr.mxu0 0.0
    %482 = vmatpush1.msra.mxu0 0.0
    %483 = vmatprep.subr.mxu0 0.0
    %484 = vmatpush1.msra.mxu0 0.0
    %485 = vmatprep.subr.mxu0 0.0
    %486 = vmatpush1.msra.mxu0 0.0
    %487 = vmatprep.subr.mxu0 0.0
    %488 = vmatpush1.msra.mxu0 0.0
    %489 = vmatprep.subr.mxu0 0.0
    %490 = vmatpush1.msra.mxu0 0.0
    %491 = vmatprep.subr.mxu0 0.0
    %492 = vmatpush1.msra.mxu0 0.0
    %493 = vmatprep.subr.mxu0 0.0
    %494 = vmatpush1.msra.mxu0 0.0
    %495 = vmatprep.subr.mxu0 0.0
    %496 = vmatpush1.msra.mxu0 0.0
    %497 = vmatprep.subr.mxu0 0.0
    %498 = vmatpush1.msra.mxu0 0.0
    %499 = vmatprep.subr.mxu0 0.0
    %500 = vmatpush1.msra.mxu0 0.0
    %501 = vmatprep.subr.mxu0 0.0
    %502 = vmatpush1.msra.mxu0 0.0
    %503 = vmatprep.subr.mxu0 0.0
    %504 = vmatpush1.msra.mxu0 0.0
    %505 = vmatprep.subr.mxu0 0.0
    %506 = vmatpush1.msra.mxu0 0.0
    %507 = vmatprep.subr.mxu0 0.0
    %508 = vmatpush1.msra.mxu0 0.0
    %509 = vmatprep.subr.mxu0 0.0
    %510 = vmatpush1.msra.mxu0 0.0
    %511 = vmatprep.mubr.f32.mxu0 0.0
    %512 = vmatmul.mubr.f32.gmra.mrb[0].mxu0 %v445
    %v513 = vpop.f32.mrb[0].mxu0
    %v514 = vadd.f32 %v441, %v513
    %v515 = vpop.f32.mrb[0].mxu0
    %516 = vdwg.mxu0
    %517 = vst.msk [vmem:[#allocation2] sm:$0xff] %vm443, %v514
    // Predicated region
    $region26: #{tpu_custom_call.1} parent=1 // pred_check
      _
    $region27: #{tpu_custom_call.1} parent=1 // pred_check_branch
      %519 = sbr.rel (0) target = $region29
    $region28: #{tpu_custom_call.1} parent=1 // pred_region
      %s521 = ssub.s32 128, 128
      %522 = vsyncadd [#allocation3], %s521
      %s524 = sshll.u32 [#allocation2], 4
      %s525 = int_to_ptr.vmem [resolvable:$true] %s524
      %527 = dma.vmem_to_hbm [thread:$0]  %s525, 128, %s6, [#allocation3]
    $region29: #{tpu_custom_call.1} parent=1 // pred_fallthru
      _
    // Predicated region
    $region30: #{tpu_custom_call.1} parent=1 // pred_check
      _
    $region31: #{tpu_custom_call.1} parent=1 // pred_check_branch
      %529 = sbr.rel (0) target = $region33
    $region32: #{tpu_custom_call.1} parent=1 // pred_region
      %530 = dma.done [#allocation3], 128
    $region33: #{tpu_custom_call.1} parent=1 // pred_fallthru
      _
    %531 = vsyncpa [#allocation3], 1

</llo_original>
